<compile_context>
chip_gen: v6e
topology: v6e:2x2x1
jax: 0.10.0
libtpu: 0.0.40
codegen_flags: <defaults>
</compile_context>

<pallas_src>
import functools

import jax
import jax.numpy as jnp
from jax.experimental import pallas as pl
from jax.experimental.pallas import tpu as pltpu


# ----------------------------- Pallas kernel ------------------------------

def classification_head_kernel(eeg_ref, nirs_ref, cross_ref, attnw_ref,
                               ws_ref, b_ref, out_ref, *, num_cross):
    """One grid step = one (block_b, E) batch slab through the whole head.

    cross_ref : (M, Bt, E)  all AttentionFusion inputs in one stacked operand
    attnw_ref : (1, E)      AttentionFusion weight (pre-transposed)
    ws_ref    : (3, E, Cp)  [We*w1, Wn*w2, Wf*w3]  (branch softmax pre-folded, zero-padded)
    b_ref     : (1, Cp)     w1*be + w2*bn + w3*bf  (pre-summed, zero-padded)
    """
    f32 = jnp.float32
    eeg = eeg_ref[...].astype(f32)           # (Bt, E)
    nirs = nirs_ref[...].astype(f32)         # (Bt, E)
    attn_w = attnw_ref[...].astype(f32)      # (1, E)

    # ---- AttentionFusion over the M cross tensors (full-tile math, exact softmax) ----
    crosses = [cross_ref[m].astype(f32) for m in range(num_cross)]            # M x (Bt, E)
    scores = [jnp.sum(c * attn_w, axis=-1, keepdims=True) for c in crosses]   # M x (Bt, 1)
    s_max = scores[0]
    for s in scores[1:]:
        s_max = jnp.maximum(s_max, s)
    exps = [jnp.exp(s - s_max) for s in scores]
    denom = exps[0]
    for e in exps[1:]:
        denom = denom + e
    inv_denom = 1.0 / denom                                                   # exact reciprocal
    fused = crosses[0] * (exps[0] * inv_denom)
    for c, e in zip(crosses[1:], exps[1:]):
        fused = fused + c * (e * inv_denom)                                   # (Bt, E)

    # ---- three branch Linears; softmax(self.w) is already folded into ws_ref / b_ref ----
    wdt = ws_ref.dtype   # f32 by default; bf16 when prepared with weights_dtype=bf16
    logits = jnp.dot(eeg.astype(wdt), ws_ref[0], preferred_element_type=f32)
    logits = logits + jnp.dot(nirs.astype(wdt), ws_ref[1], preferred_element_type=f32)
    logits = logits + jnp.dot(fused.astype(wdt), ws_ref[2], preferred_element_type=f32)
    logits = logits + b_ref[...].astype(f32)

    out_ref[...] = logits.astype(out_ref.dtype)   # (Bt, Cp) unmasked, lane-dense store


# ----------------------------- one-time parameter preparation ----------------

def prepare_params(params, *, weights_dtype=jnp.float32):
    """Hoisted, one-time preprocessing: pad to 128 lanes, stack the three Linear
    weights, fold softmax(self.w) into weights/biases, transpose the attention row."""
    E, C = params["we"].shape
    Cp = max(128, pl.cdiv(C, 128) * 128)

    wsm = jax.nn.softmax(params["w"].astype(jnp.float32))        # exact 3-way softmax (host)
    pad = lambda a: jnp.pad(a, ((0, 0), (0, Cp - C)))            # zero-pad weight AND bias

    ws = jnp.stack([pad(params["we"]) * wsm[0],
                    pad(params["wn"]) * wsm[1],
                    pad(params["wf"]) * wsm[2]]).astype(weights_dtype)        # (3, E, Cp)
    b = (pad(params["be"]) * wsm[0]
         + pad(params["bn"]) * wsm[1]
         + pad(params["bf"]) * wsm[2]).astype(jnp.float32)                    # (1, Cp)
    attn_row = params["attn_w"].reshape(1, E).astype(jnp.float32)             # (1, E)

    return {"attn_row": attn_row, "ws": ws, "b": b,
            "num_classes": C, "padded_classes": Cp}


# ----------------------------- wrapper -------------------------------------

def classification_head(eeg, nirs, cross_list, prepared, *,
                        block_b=None, vmem_limit_bytes=None):
    """Fused ClassificationHead forward.

    eeg, nirs: (B, E); cross_list: list of M tensors (B, E). Returns (B, num_classes).
    """
    B, E = eeg.shape
    M = len(cross_list)
    C = prepared["num_classes"]
    Cp = prepared["padded_classes"]

    # Default: whole batch in ONE grid step (per-step overhead dominates at small sizes).
    # For large B pick the biggest block_b that fits VMEM; round down to a divisor of B.
    if block_b is None or block_b >= B:
        block_b = B
    else:
        while B % block_b != 0:
            block_b -= 1
    grid = (B // block_b,)

    # One activation operand for all M cross tensors (one DMA descriptor instead of M).
    cross = jnp.stack(cross_list)                                  # (M, B, E)

    row_spec = pl.BlockSpec((block_b, E), lambda i: (i, 0))
    cross_spec = pl.BlockSpec((M, block_b, E), lambda i: (0, i, 0))

    # Constant operands: index_map never changes -> single-buffer (halves their VMEM).
    def const(shape):
        return pl.BlockSpec(shape, lambda i, _n=len(shape): (0,) * _n,
                            pipeline_mode=pl.Buffered(1))

    kernel = functools.partial(classification_head_kernel, num_cross=M)
    out_padded = pl.pallas_call(
        kernel,
        grid=grid,
        in_specs=[row_spec, row_spec, cross_spec,
                  const((1, E)), const((3, E, Cp)), const((1, Cp))],
        out_specs=pl.BlockSpec((block_b, Cp), lambda i: (i, 0)),
        out_shape=jax.ShapeDtypeStruct((B, Cp), jnp.float32),
        compiler_params=pltpu.CompilerParams(
            dimension_semantics=("parallel",),
            # Set explicitly when block_b is scaled up (v5e scoped default is 16 MiB,
            # v7x physical VMEM is 64 MiB); None keeps the platform default here.
            vmem_limit_bytes=vmem_limit_bytes,
        ),
    )(eeg, nirs, cross, prepared["attn_row"], prepared["ws"], prepared["b"])
    return out_padded[:, :C]


# ----------------------------- reference (pure JAX) -------------------------

def classification_head_ref(eeg, nirs, cross_list, params):
    attn_w = params["attn_w"]                                            # (E, 1)
    scores = jnp.concatenate([c @ attn_w for c in cross_list], axis=-1)  # (B, M)
    alpha = jax.nn.softmax(scores, axis=-1)
    fused = sum(c * alpha[:, i:i + 1] for i, c in enumerate(cross_list))
    w = params["w"]
    wsm = jnp.exp(w) / jnp.sum(jnp.exp(w))
    out = ((eeg @ params["we"] + params["be"][0]) * wsm[0]
           + (nirs @ params["wn"] + params["bn"][0]) * wsm[1]
           + (fused @ params["wf"] + params["bf"][0]) * wsm[2])
    return out


# ----------------------------- param init -----------------------------------

def init_params(key, emb_size, num_classes):
    ks = jax.random.split(key, 7)
    s = 0.05
    return {
        # AttentionFusion.weight ~ randn(emb_size, 1)
        "attn_w": jax.random.normal(ks[0], (emb_size, 1), jnp.float32),
        # ClassificationHead.w initial value [1.0, 1.0, 0.5]
        "w": jnp.array([1.0, 1.0, 0.5], jnp.float32),
        # Linear weights stored pre-transposed as (in, out); PyTorch stores (out, in).
        "we": s * jax.random.normal(ks[1], (emb_size, num_classes), jnp.float32),
        "be": s * jax.random.normal(ks[2], (1, num_classes), jnp.float32),
        "wn": s * jax.random.normal(ks[3], (emb_size, num_classes), jnp.float32),
        "bn": s * jax.random.normal(ks[4], (1, num_classes), jnp.float32),
        "wf": s * jax.random.normal(ks[5], (emb_size, num_classes), jnp.float32),
        "bf": s * jax.random.normal(ks[6], (1, num_classes), jnp.float32),
    }


# ----------------------------- main ------------------------------------------

if __name__ == "__main__":
    # batch, emb_size, num_classes, number of tensors fused by AttentionFusion
    B, E, C, M = 16, 32, 4, 3

    key = jax.random.PRNGKey(0)
    k_eeg, k_nirs, k_cross, k_p = jax.random.split(key, 4)
    eeg = jax.random.normal(k_eeg, (B, E), jnp.float32)
    nirs = jax.random.normal(k_nirs, (B, E), jnp.float32)
    cross_list = [jax.random.normal(k, (B, E), jnp.float32)
                  for k in jax.random.split(k_cross, M)]
    params = init_params(k_p, E, C)

    # One-time parameter preparation (padding / stacking / branch-softmax folding).
    # TODO(synk): at production emb_size/num_classes use weights_dtype=jnp.bfloat16.
    prepared = prepare_params(params)

    out = classification_head(eeg, nirs, cross_list, prepared)
    out = jax.block_until_ready(out)

    ref = classification_head_ref(eeg, nirs, cross_list, params)
    assert out.shape == (B, C)
    assert jnp.allclose(out, ref, atol=1e-3, rtol=1e-3), \
        float(jnp.max(jnp.abs(out - ref)))

    print("KERNEL_OK")
</pallas_src>

<mosaic_0001>
module attributes {stable_mosaic.version = 11 : i64} {
  func.func @classification_head_kernel(%arg0: i32, %arg1: memref<16x32xf32, #tpu.memory_space<vmem>>, %arg2: memref<16x32xf32, #tpu.memory_space<vmem>>, %arg3: memref<3x16x32xf32, #tpu.memory_space<vmem>>, %arg4: memref<1x32xf32, #tpu.memory_space<vmem>>, %arg5: memref<3x32x128xf32, #tpu.memory_space<vmem>>, %arg6: memref<1x128xf32, #tpu.memory_space<vmem>>, %arg7: memref<16x128xf32, #tpu.memory_space<vmem>>) attributes {dimension_semantics = [#tpu.dimension_semantics<parallel>], iteration_bounds = array<i64: 1>, scalar_prefetch = 0 : i64, scratch_operands = 0 : i64, tpu.core_type = #tpu.core_type<tc>, window_params = [{transform_indices = @transform_0, window_bounds = array<i64: 16, 32>}, {transform_indices = @transform_1, window_bounds = array<i64: 16, 32>}, {transform_indices = @transform_2, window_bounds = array<i64: 3, 16, 32>}, {pipeline_mode = #tpu.pipeline_mode<synchronous>, transform_indices = @transform_3, window_bounds = array<i64: 1, 32>}, {pipeline_mode = #tpu.pipeline_mode<synchronous>, transform_indices = @transform_4, window_bounds = array<i64: 3, 32, 128>}, {pipeline_mode = #tpu.pipeline_mode<synchronous>, transform_indices = @transform_5, window_bounds = array<i64: 1, 128>}, {transform_indices = @transform_6, window_bounds = array<i64: 16, 128>}]} {
    %c0 = arith.constant 0 : index
    %c0_0 = arith.constant 0 : index
    %0 = vector.load %arg1[%c0, %c0_0] : memref<16x32xf32, #tpu.memory_space<vmem>>, vector<16x32xf32>
    %c0_1 = arith.constant 0 : index
    %c0_2 = arith.constant 0 : index
    %1 = vector.load %arg2[%c0_1, %c0_2] : memref<16x32xf32, #tpu.memory_space<vmem>>, vector<16x32xf32>
    %c0_3 = arith.constant 0 : index
    %c0_4 = arith.constant 0 : index
    %2 = vector.load %arg4[%c0_3, %c0_4] : memref<1x32xf32, #tpu.memory_space<vmem>>, vector<1x32xf32>
    %c0_5 = arith.constant 0 : index
    %c0_6 = arith.constant 0 : index
    %c0_7 = arith.constant 0 : index
    %3 = vector.load %arg3[%c0_5, %c0_6, %c0_7] : memref<3x16x32xf32, #tpu.memory_space<vmem>>, vector<1x16x32xf32>
    %4 = vector.shape_cast %3 : vector<1x16x32xf32> to vector<16x32xf32>
    %c1 = arith.constant 1 : index
    %c0_8 = arith.constant 0 : index
    %c0_9 = arith.constant 0 : index
    %5 = vector.load %arg3[%c1, %c0_8, %c0_9] : memref<3x16x32xf32, #tpu.memory_space<vmem>>, vector<1x16x32xf32>
    %6 = vector.shape_cast %5 : vector<1x16x32xf32> to vector<16x32xf32>
    %c2 = arith.constant 2 : index
    %c0_10 = arith.constant 0 : index
    %c0_11 = arith.constant 0 : index
    %7 = vector.load %arg3[%c2, %c0_10, %c0_11] : memref<3x16x32xf32, #tpu.memory_space<vmem>>, vector<1x16x32xf32>
    %8 = vector.shape_cast %7 : vector<1x16x32xf32> to vector<16x32xf32>
    %9 = vector.broadcast %2 : vector<1x32xf32> to vector<16x32xf32>
    %10 = arith.mulf %4, %9 : vector<16x32xf32>
    %cst = arith.constant dense<0.000000e+00> : vector<16xf32>
    %11 = vector.multi_reduction <add>, %10, %cst [1] : vector<16x32xf32> to vector<16xf32>
    %12 = vector.shape_cast %11 : vector<16xf32> to vector<16x1xf32>
    %13 = vector.broadcast %2 : vector<1x32xf32> to vector<16x32xf32>
    %14 = arith.mulf %6, %13 : vector<16x32xf32>
    %cst_12 = arith.constant dense<0.000000e+00> : vector<16xf32>
    %15 = vector.multi_reduction <add>, %14, %cst_12 [1] : vector<16x32xf32> to vector<16xf32>
    %16 = vector.shape_cast %15 : vector<16xf32> to vector<16x1xf32>
    %17 = vector.broadcast %2 : vector<1x32xf32> to vector<16x32xf32>
    %18 = arith.mulf %8, %17 : vector<16x32xf32>
    %cst_13 = arith.constant dense<0.000000e+00> : vector<16xf32>
    %19 = vector.multi_reduction <add>, %18, %cst_13 [1] : vector<16x32xf32> to vector<16xf32>
    %20 = vector.shape_cast %19 : vector<16xf32> to vector<16x1xf32>
    %21 = arith.maximumf %12, %16 : vector<16x1xf32>
    %22 = arith.maximumf %21, %20 : vector<16x1xf32>
    %23 = arith.subf %12, %22 : vector<16x1xf32>
    %24 = math.exp %23 : vector<16x1xf32>
    %25 = arith.subf %16, %22 : vector<16x1xf32>
    %26 = math.exp %25 : vector<16x1xf32>
    %27 = arith.subf %20, %22 : vector<16x1xf32>
    %28 = math.exp %27 : vector<16x1xf32>
    %29 = arith.addf %24, %26 : vector<16x1xf32>
    %30 = arith.addf %29, %28 : vector<16x1xf32>
    %cst_14 = arith.constant 1.000000e+00 : f32
    %31 = vector.broadcast %cst_14 : f32 to vector<16x1xf32>
    %32 = arith.divf %31, %30 : vector<16x1xf32>
    %33 = arith.mulf %24, %32 : vector<16x1xf32>
    %34 = vector.broadcast %33 : vector<16x1xf32> to vector<16x32xf32>
    %35 = arith.mulf %4, %34 : vector<16x32xf32>
    %36 = arith.mulf %26, %32 : vector<16x1xf32>
    %37 = vector.broadcast %36 : vector<16x1xf32> to vector<16x32xf32>
    %38 = arith.mulf %6, %37 : vector<16x32xf32>
    %39 = arith.addf %35, %38 : vector<16x32xf32>
    %40 = arith.mulf %28, %32 : vector<16x1xf32>
    %41 = vector.broadcast %40 : vector<16x1xf32> to vector<16x32xf32>
    %42 = arith.mulf %8, %41 : vector<16x32xf32>
    %43 = arith.addf %39, %42 : vector<16x32xf32>
    %c0_15 = arith.constant 0 : index
    %c0_16 = arith.constant 0 : index
    %c0_17 = arith.constant 0 : index
    %44 = vector.load %arg5[%c0_15, %c0_16, %c0_17] : memref<3x32x128xf32, #tpu.memory_space<vmem>>, vector<1x32x128xf32>
    %45 = vector.shape_cast %44 : vector<1x32x128xf32> to vector<32x128xf32>
    %cst_18 = arith.constant dense<0.000000e+00> : vector<16x128xf32>
    %46 = tpu.matmul %0, %45, %cst_18 {dimension_numbers = #tpu.dot_dimension_numbers<[1], [0], [0], [1], [0, 0, 1, 1], [], []>} : vector<16x32xf32>, vector<32x128xf32>, vector<16x128xf32> -> vector<16x128xf32>
    %c1_19 = arith.constant 1 : index
    %c0_20 = arith.constant 0 : index
    %c0_21 = arith.constant 0 : index
    %47 = vector.load %arg5[%c1_19, %c0_20, %c0_21] : memref<3x32x128xf32, #tpu.memory_space<vmem>>, vector<1x32x128xf32>
    %48 = vector.shape_cast %47 : vector<1x32x128xf32> to vector<32x128xf32>
    %cst_22 = arith.constant dense<0.000000e+00> : vector<16x128xf32>
    %49 = tpu.matmul %1, %48, %cst_22 {dimension_numbers = #tpu.dot_dimension_numbers<[1], [0], [0], [1], [0, 0, 1, 1], [], []>} : vector<16x32xf32>, vector<32x128xf32>, vector<16x128xf32> -> vector<16x128xf32>
    %50 = arith.addf %46, %49 : vector<16x128xf32>
    %c2_23 = arith.constant 2 : index
    %c0_24 = arith.constant 0 : index
    %c0_25 = arith.constant 0 : index
    %51 = vector.load %arg5[%c2_23, %c0_24, %c0_25] : memref<3x32x128xf32, #tpu.memory_space<vmem>>, vector<1x32x128xf32>
    %52 = vector.shape_cast %51 : vector<1x32x128xf32> to vector<32x128xf32>
    %cst_26 = arith.constant dense<0.000000e+00> : vector<16x128xf32>
    %53 = tpu.matmul %43, %52, %cst_26 {dimension_numbers = #tpu.dot_dimension_numbers<[1], [0], [0], [1], [0, 0, 1, 1], [], []>} : vector<16x32xf32>, vector<32x128xf32>, vector<16x128xf32> -> vector<16x128xf32>
    %54 = arith.addf %50, %53 : vector<16x128xf32>
    %c0_27 = arith.constant 0 : index
    %c0_28 = arith.constant 0 : index
    %55 = vector.load %arg6[%c0_27, %c0_28] : memref<1x128xf32, #tpu.memory_space<vmem>>, vector<1x128xf32>
    %56 = vector.broadcast %55 : vector<1x128xf32> to vector<16x128xf32>
    %57 = arith.addf %54, %56 : vector<16x128xf32>
    %c0_29 = arith.constant 0 : index
    %c0_30 = arith.constant 0 : index
    %58 = vector.load %arg7[%c0_29, %c0_30] : memref<16x128xf32, #tpu.memory_space<vmem>>, vector<16x128xf32>
    tpu.vector_store %arg7[%c0_29, %c0_30], %57 {strides = array<i32>} : memref<16x128xf32, #tpu.memory_space<vmem>>, vector<16x128xf32>,
    return
  }
  func.func @transform_0(%arg0: i32) -> (i32, i32) {
    %c0_i32 = arith.constant 0 : i32
    %c0_i32_0 = arith.constant 0 : i32
    return %arg0, %c0_i32 : i32, i32
  }
  func.func @transform_1(%arg0: i32) -> (i32, i32) {
    %c0_i32 = arith.constant 0 : i32
    %c0_i32_0 = arith.constant 0 : i32
    return %arg0, %c0_i32 : i32, i32
  }
  func.func @transform_2(%arg0: i32) -> (i32, i32, i32) {
    %c0_i32 = arith.constant 0 : i32
    %c0_i32_0 = arith.constant 0 : i32
    %c0_i32_1 = arith.constant 0 : i32
    return %c0_i32, %arg0, %c0_i32_0 : i32, i32, i32
  }
  func.func @transform_3(%arg0: i32) -> (i32, i32) {
    %c0_i32 = arith.constant 0 : i32
    %c0_i32_0 = arith.constant 0 : i32
    %c0_i32_1 = arith.constant 0 : i32
    return %c0_i32, %c0_i32_0 : i32, i32
  }
  func.func @transform_4(%arg0: i32) -> (i32, i32, i32) {
    %c0_i32 = arith.constant 0 : i32
    %c0_i32_0 = arith.constant 0 : i32
    %c0_i32_1 = arith.constant 0 : i32
    %c0_i32_2 = arith.constant 0 : i32
    return %c0_i32, %c0_i32_0, %c0_i32_1 : i32, i32, i32
  }
  func.func @transform_5(%arg0: i32) -> (i32, i32) {
    %c0_i32 = arith.constant 0 : i32
    %c0_i32_0 = arith.constant 0 : i32
    %c0_i32_1 = arith.constant 0 : i32
    return %c0_i32, %c0_i32_0 : i32, i32
  }
  func.func @transform_6(%arg0: i32) -> (i32, i32) {
    %c0_i32 = arith.constant 0 : i32
    %c0_i32_0 = arith.constant 0 : i32
    return %arg0, %c0_i32 : i32, i32
  }
}

</mosaic_0001>

<llo_original>
// kernel: tpu_custom_call.1
$region0: #{tpu_custom_call.1}
  #allocation0 [shape = 'u32[]', space=smem, size = 0x4, offset = 0x4, fixed_abs, tag = 'smem constant byte address 0x4 - core index']
  #allocation1 [shape = 'u32[144,128]{1,0:T(1,128)}', space=vmem, size = 0x12000, scoped, tag = 'internal scratch']
  %s0 = inlined_call_operand.hbm [shape: f32[16,32], index: 0, kind: input, shape index: {}]
  %s1 = inlined_call_operand.hbm [shape: f32[16,32], index: 1, kind: input, shape index: {}]
  %s2 = inlined_call_operand.hbm [shape: f32[3,16,32], index: 2, kind: input, shape index: {}]
  %s3 = inlined_call_operand.vmem [shape: f32[1,32], index: 3, kind: input, shape index: {}]
  %s4 = inlined_call_operand.hbm [shape: f32[3,32,128], index: 4, kind: input, shape index: {}]
  %s5 = inlined_call_operand.vmem [shape: f32[1,128], index: 5, kind: input, shape index: {}]
  %s6 = inlined_call_operand.hbm [shape: f32[16,128], index: 6, kind: output, shape index: {}]
  %s7 = sld [smem:[#allocation0]]
  $region50: #{tpu_custom_call.1} parent=0
    _
  %s9 = ssub.s32 1, %s7
  %s10 = scalar_select 0, %s9, %s7
  $region1: #{tpu_custom_call.1} parent=0
    #allocation2 [shape = 'u8[8192]{0}', space=vmem, size = 0x2000, scoped, tag = 'input window, operand 0, single buffered']
    #allocation3 [shape = 's32[1]{0}', space=sflag, size = 0x4, scoped, tag = 'scoped memory for tpu_custom_call.1']
    #allocation4 [shape = 's32[1]{0}', space=sflag, size = 0x4, scoped, tag = 'scoped memory for tpu_custom_call.1']
    #allocation5 [shape = 'u8[8192]{0}', space=vmem, size = 0x2000, scoped, tag = 'input window, operand 1, single buffered']
    #allocation6 [shape = 's32[1]{0}', space=sflag, size = 0x4, scoped, tag = 'scoped memory for tpu_custom_call.1']
    #allocation7 [shape = 'u8[24576]{0}', space=vmem, size = 0x6000, scoped, tag = 'input window, operand 2, single buffered']
    #allocation8 [shape = 'u8[49152]{0}', space=vmem, size = 0xc000, scoped, tag = 'input window, operand 4, single buffered']
    #allocation9 [shape = 's32[1]{0}', space=sflag, size = 0x4, scoped, tag = 'scoped memory for tpu_custom_call.1']
    #allocation10 [shape = 'u8[8192]{0}', space=vmem, size = 0x2000, scoped, tag = 'output window, operand 0, single buffered']
    %11 = vsyncpa [#allocation3], 0
    %12 = vsyncpa [#allocation6], 0
    %13 = vsyncpa [#allocation9], 0
    %14 = vsyncpa [#allocation4], 0
    // Predicated region
    $region2: #{tpu_custom_call.1} parent=1 // pred_check
      _
    $region3: #{tpu_custom_call.1} parent=1 // pred_check_branch
      %16 = sbr.rel (0) target = $region5
    $region4: #{tpu_custom_call.1} parent=1 // pred_region
      %s18 = ssub.s32 256, 256
      %19 = vsyncadd [#allocation3], %s18
      %s20 = sshll.u32 [#allocation2], 4
      %s21 = int_to_ptr.vmem [resolvable:$true] %s20
      %26 = dma.hbm_to_vmem [thread:$0]  %s0, 256, %s21, [#allocation3], 128, 128, 8
    $region5: #{tpu_custom_call.1} parent=1 // pred_fallthru
      _
    // Predicated region
    $region6: #{tpu_custom_call.1} parent=1 // pred_check
      _
    $region7: #{tpu_custom_call.1} parent=1 // pred_check_branch
      %28 = sbr.rel (0) target = $region9
    $region8: #{tpu_custom_call.1} parent=1 // pred_region
      %s30 = ssub.s32 256, 256
      %31 = vsyncadd [#allocation6], %s30
      %s32 = sshll.u32 [#allocation5], 4
      %s33 = int_to_ptr.vmem [resolvable:$true] %s32
      %38 = dma.hbm_to_vmem [thread:$0]  %s1, 256, %s33, [#allocation6], 128, 128, 8
    $region9: #{tpu_custom_call.1} parent=1 // pred_fallthru
      _
    // Predicated region
    $region10: #{tpu_custom_call.1} parent=1 // pred_check
      _
    $region11: #{tpu_custom_call.1} parent=1 // pred_check_branch
      %40 = sbr.rel (0) target = $region13
    $region12: #{tpu_custom_call.1} parent=1 // pred_region
      %s42 = ssub.s32 768, 768
      %43 = vsyncadd [#allocation6], %s42
      %s44 = sshll.u32 [#allocation7], 4
      %s45 = int_to_ptr.vmem [resolvable:$true] %s44
      %50 = dma.hbm_to_vmem [thread:$0]  %s2, 768, %s45, [#allocation6], 128, 128, 8
    $region13: #{tpu_custom_call.1} parent=1 // pred_fallthru
      _
    // Predicated region
    $region14: #{tpu_custom_call.1} parent=1 // pred_check
      _
    $region15: #{tpu_custom_call.1} parent=1 // pred_check_branch
      %52 = sbr.rel (0) target = $region17
    $region16: #{tpu_custom_call.1} parent=1 // pred_region
      _
    $region17: #{tpu_custom_call.1} parent=1 // pred_fallthru
      _
    // Predicated region
    $region18: #{tpu_custom_call.1} parent=1 // pred_check
      _
    $region19: #{tpu_custom_call.1} parent=1 // pred_check_branch
      %54 = sbr.rel (0) target = $region21
    $region20: #{tpu_custom_call.1} parent=1 // pred_region
      %s56 = ssub.s32 1536, 1536
      %57 = vsyncadd [#allocation9], %s56
      %s58 = sshll.u32 [#allocation8], 4
      %s59 = int_to_ptr.vmem [resolvable:$true] %s58
      %64 = dma.hbm_to_vmem [thread:$0]  %s4, 1536, %s59, [#allocation9], 128, 128, 8
    $region21: #{tpu_custom_call.1} parent=1 // pred_fallthru
      _
    // Predicated region
    $region22: #{tpu_custom_call.1} parent=1 // pred_check
      _
    $region23: #{tpu_custom_call.1} parent=1 // pred_check_branch
      %66 = sbr.rel (0) target = $region25
    $region24: #{tpu_custom_call.1} parent=1 // pred_region
      _
    $region25: #{tpu_custom_call.1} parent=1 // pred_fallthru
      _
    // Predicated region
    $region26: #{tpu_custom_call.1} parent=1 // pred_check
      _
    $region27: #{tpu_custom_call.1} parent=1 // pred_check_branch
      %68 = sbr.rel (0) target = $region29
    $region28: #{tpu_custom_call.1} parent=1 // pred_region
      %69 = dma.done [#allocation3], 256
    $region29: #{tpu_custom_call.1} parent=1 // pred_fallthru
      _
    // Predicated region
    $region30: #{tpu_custom_call.1} parent=1 // pred_check
      _
    $region31: #{tpu_custom_call.1} parent=1 // pred_check_branch
      %71 = sbr.rel (0) target = $region33
    $region32: #{tpu_custom_call.1} parent=1 // pred_region
      %72 = dma.done [#allocation6], 256
    $region33: #{tpu_custom_call.1} parent=1 // pred_fallthru
      _
    // Predicated region
    $region34: #{tpu_custom_call.1} parent=1 // pred_check
      _
    $region35: #{tpu_custom_call.1} parent=1 // pred_check_branch
      %74 = sbr.rel (0) target = $region37
    $region36: #{tpu_custom_call.1} parent=1 // pred_region
      %75 = dma.done [#allocation6], 768
    $region37: #{tpu_custom_call.1} parent=1 // pred_fallthru
      _
    // Predicated region
    $region38: #{tpu_custom_call.1} parent=1 // pred_check
      _
    $region39: #{tpu_custom_call.1} parent=1 // pred_check_branch
      %77 = sbr.rel (0) target = $region41
    $region40: #{tpu_custom_call.1} parent=1 // pred_region
      %78 = dma.done [#allocation9], 1536
    $region41: #{tpu_custom_call.1} parent=1 // pred_fallthru
      _
    %v79 = vld [vmem:[#allocation2] sm:$0xff]
    %v80 = vld [vmem:[#allocation2 + $0x8] sm:$0xff]
    %v81 = vld [vmem:[#allocation5] sm:$0xff]
    %v82 = vld [vmem:[#allocation5 + $0x8] sm:$0xff]
    %v83 = vld [vmem:[%s3] sm:$0x1]
    %v84 = vld [vmem:[#allocation7] sm:$0xff]
    %v85 = vld [vmem:[#allocation7 + $0x8] sm:$0xff]
    %s86 = scalar_lea.vmem [#allocation7], 16
    %v87 = vld [vmem:[%s86] sm:$0xff]
    %v88 = vld [vmem:[%s86 + $0x8] sm:$0xff]
    %s89 = scalar_lea.vmem [#allocation7], 32
    %v90 = vld [vmem:[%s89] sm:$0xff]
    %v91 = vld [vmem:[%s89 + $0x8] sm:$0xff]
    %v93 = vlaneseq
    %v94 = vshrl.u32 %v93, 7
    %v95 = vsub.s32 0, %v94
    %v96 = vrot.slane %v83, %v95
    %v98 = vmul.f32 %v84, %v96
    %v99 = vmul.f32 %v85, %v96
    %vm100 = vcmask 261120
    %v101 = vsel %vm100, %v98, 0.0
    %102 = vadd.xlane.f32.xlu0 %v101
    %v103 = vpop.xlane.xlu0 %102
    %v104 = vsel %vm100, %v99, 0.0
    %105 = vadd.xlane.f32.xlu0 %v104
    %v106 = vpop.xlane.xlu0 %105
    %v107 = vmul.f32 %v87, %v96
    %v108 = vmul.f32 %v88, %v96
    %v109 = vsel %vm100, %v107, 0.0
    %110 = vadd.xlane.f32.xlu0 %v109
    %v111 = vpop.xlane.xlu0 %110
    %v112 = vsel %vm100, %v108, 0.0
    %113 = vadd.xlane.f32.xlu0 %v112
    %v114 = vpop.xlane.xlu0 %113
    %v115 = vmul.f32 %v90, %v96
    %v116 = vmul.f32 %v91, %v96
    %v117 = vsel %vm100, %v115, 0.0
    %118 = vadd.xlane.f32.xlu0 %v117
    %v119 = vpop.xlane.xlu0 %118
    %v120 = vsel %vm100, %v116, 0.0
    %121 = vadd.xlane.f32.xlu0 %v120
    %v122 = vpop.xlane.xlu0 %121
    %v123 = vmax.f32 %v103, %v111
    %v124 = vmax.f32 %v106, %v114
    %v125 = vmax.f32 %v123, %v119
    %v126 = vmax.f32 %v124, %v122
    %v127 = vsub.f32 %v103, %v125
    %v128 = vsub.f32 %v106, %v126
    %v129 = vmul.f32 %v127, 1.442695
    %v130 = vpow.pop %v129
    %v131 = vmul.f32 %v128, 1.442695
    %v132 = vpow.pop %v131
    %v133 = vsub.f32 %v111, %v125
    %v134 = vsub.f32 %v114, %v126
    %v135 = vmul.f32 %v133, 1.442695
    %v136 = vpow.pop %v135
    %v137 = vmul.f32 %v134, 1.442695
    %v138 = vpow.pop %v137
    %v139 = vsub.f32 %v119, %v125
    %v140 = vsub.f32 %v122, %v126
    %v141 = vmul.f32 %v139, 1.442695
    %v142 = vpow.pop %v141
    %v143 = vmul.f32 %v140, 1.442695
    %v144 = vpow.pop %v143
    %v145 = vadd.f32 %v130, %v136
    %v146 = vadd.f32 %v132, %v138
    %v147 = vadd.f32 %v145, %v142
    %v148 = vadd.f32 %v146, %v144
    %v149 = vrcp.pop %v147
    %v150 = vmul.f32 1.0, %v149
    %v151 = vrcp.pop %v148
    %v152 = vmul.f32 1.0, %v151
    %v153 = vmul.f32 %v130, %v150
    %v154 = vmul.f32 %v132, %v152
    %v155 = vmul.f32 %v84, %v153
    %v156 = vmul.f32 %v85, %v154
    %v157 = vmul.f32 %v136, %v150
    %v158 = vmul.f32 %v138, %v152
    %v159 = vmul.f32 %v87, %v157
    %v160 = vmul.f32 %v88, %v158
    %v161 = vadd.f32 %v155, %v159
    %v162 = vadd.f32 %v156, %v160
    %v163 = vmul.f32 %v142, %v150
    %v164 = vmul.f32 %v144, %v152
    %v165 = vmul.f32 %v90, %v163
    %v166 = vmul.f32 %v91, %v164
    %v167 = vadd.f32 %v161, %v165
    %v168 = vadd.f32 %v162, %v166
    %v169 = vld [vmem:[#allocation8] sm:$0xff]
    %v170 = vld [vmem:[#allocation8 + $0x8] sm:$0xff]
    %v171 = vld [vmem:[#allocation8 + $0x10] sm:$0xff]
    %v172 = vld [vmem:[#allocation8 + $0x18] sm:$0xff]
    %s173 = scalar_lea.vmem [#allocation8], 32
    %v174 = vld [vmem:[%s173] sm:$0xff]
    %v175 = vld [vmem:[%s173 + $0x8] sm:$0xff]
    %v176 = vld [vmem:[%s173 + $0x10] sm:$0xff]
    %v177 = vld [vmem:[%s173 + $0x18] sm:$0xff]
    %v179 = vsel %vm100, %v81, 0
    %v182 = vsel %vm100, %v82, 0
    %184 = vmatprep.subr.mxu0 0.0
    %185 = vmatpush1.msra.mxu0 0.0
    %186 = vmatprep.subr.mxu0 0.0
    %187 = vmatpush1.msra.mxu0 0.0
    %188 = vmatprep.subr.mxu0 0.0
    %189 = vmatpush1.msra.mxu0 0.0
    %190 = vmatprep.subr.mxu0 0.0
    %191 = vmatpush1.msra.mxu0 0.0
    %192 = vmatprep.subr.mxu0 0.0
    %193 = vmatpush1.msra.mxu0 0.0
    %194 = vmatprep.subr.mxu0 0.0
    %195 = vmatpush1.msra.mxu0 0.0
    %196 = vmatprep.subr.mxu0 0.0
    %197 = vmatpush1.msra.mxu0 0.0
    %198 = vmatprep.subr.mxu0 0.0
    %199 = vmatpush1.msra.mxu0 0.0
    %200 = vmatprep.subr.mxu0 0.0
    %201 = vmatpush1.msra.mxu0 0.0
    %202 = vmatprep.subr.mxu0 0.0
    %203 = vmatpush1.msra.mxu0 0.0
    %204 = vmatprep.subr.mxu0 0.0
    %205 = vmatpush1.msra.mxu0 0.0
    %206 = vmatprep.subr.mxu0 0.0
    %207 = vmatpush1.msra.mxu0 0.0
    %208 = vmatprep.subr.mxu0 0.0
    %209 = vmatpush1.msra.mxu0 %v177
    %210 = vmatprep.subr.mxu0 0.0
    %211 = vmatpush1.msra.mxu0 %v176
    %212 = vmatprep.subr.mxu0 0.0
    %213 = vmatpush1.msra.mxu0 %v175
    %214 = vmatprep.subr.mxu0 0.0
    %215 = vmatpush1.msra.mxu0 %v174
    %216 = vmatprep.subr.mxu0 0.0
    %217 = vmatpush2.msra.mxu0 0.0
    %218 = vmatprep.subr.mxu0 0.0
    %219 = vmatpush2.msra.mxu0 0.0
    %220 = vmatprep.subr.mxu0 0.0
    %221 = vmatpush2.msra.mxu0 0.0
    %222 = vmatprep.subr.mxu0 0.0
    %223 = vmatpush2.msra.mxu0 0.0
    %224 = vmatprep.subr.mxu0 0.0
    %225 = vmatpush2.msra.mxu0 0.0
    %226 = vmatprep.subr.mxu0 0.0
    %227 = vmatpush2.msra.mxu0 0.0
    %228 = vmatprep.subr.mxu0 0.0
    %229 = vmatpush2.msra.mxu0 0.0
    %230 = vmatprep.subr.mxu0 0.0
    %231 = vmatpush2.msra.mxu0 0.0
    %232 = vmatprep.subr.mxu0 0.0
    %233 = vmatpush2.msra.mxu0 0.0
    %234 = vmatprep.subr.mxu0 0.0
    %235 = vmatpush2.msra.mxu0 0.0
    %236 = vmatprep.subr.mxu0 0.0
    %237 = vmatpush2.msra.mxu0 0.0
    %238 = vmatprep.subr.mxu0 0.0
    %239 = vmatpush2.msra.mxu0 0.0
    %240 = vmatprep.subr.mxu0 0.0
    %241 = vmatpush2.msra.mxu0 0.0
    %242 = vmatprep.subr.mxu0 0.0
    %243 = vmatpush2.msra.mxu0 0.0
    %244 = vmatprep.subr.mxu0 0.0
    %245 = vmatpush2.msra.mxu0 0.0
    %246 = vmatprep.subr.mxu0 0.0
    %247 = vmatpush2.msra.mxu0 0.0
    %248 = vmatprep.mubr.f32.mxu0 0.0
    %249 = vmatmul.mubr.f32.gmra.mxu0 %v179
    %v250 = vpop.f32.mrf.mxu0
    %v251 = vadd.f32 0.0, %v250
    %v252 = vpop.f32.mrf.mxu0
    %253 = vmatprep.mubr.f32.mxu0 0.0
    %254 = vmatmul.mubr.f32.gmra.mxu0 %v182
    %v255 = vpop.f32.mrf.mxu0
    %v256 = vadd.f32 0.0, %v255
    %v257 = vpop.f32.mrf.mxu0
    %258 = vdwg.mxu0
    %v260 = vsel %vm100, %v79, 0
    %v263 = vsel %vm100, %v80, 0
    %265 = vmatprep.subr.mxu0 0.0
    %266 = vmatpush1.msra.mxu0 0.0
    %267 = vmatprep.subr.mxu0 0.0
    %268 = vmatpush1.msra.mxu0 0.0
    %269 = vmatprep.subr.mxu0 0.0
    %270 = vmatpush1.msra.mxu0 0.0
    %271 = vmatprep.subr.mxu0 0.0
    %272 = vmatpush1.msra.mxu0 0.0
    %273 = vmatprep.subr.mxu0 0.0
    %274 = vmatpush1.msra.mxu0 0.0
    %275 = vmatprep.subr.mxu0 0.0
    %276 = vmatpush1.msra.mxu0 0.0
    %277 = vmatprep.subr.mxu0 0.0
    %278 = vmatpush1.msra.mxu0 0.0
    %279 = vmatprep.subr.mxu0 0.0
    %280 = vmatpush1.msra.mxu0 0.0
    %281 = vmatprep.subr.mxu0 0.0
    %282 = vmatpush1.msra.mxu0 0.0
    %283 = vmatprep.subr.mxu0 0.0
    %284 = vmatpush1.msra.mxu0 0.0
    %285 = vmatprep.subr.mxu0 0.0
    %286 = vmatpush1.msra.mxu0 0.0
    %287 = vmatprep.subr.mxu0 0.0
    %288 = vmatpush1.msra.mxu0 0.0
    %289 = vmatprep.subr.mxu0 0.0
    %290 = vmatpush1.msra.mxu0 %v172
    %291 = vmatprep.subr.mxu0 0.0
    %292 = vmatpush1.msra.mxu0 %v171
    %293 = vmatprep.subr.mxu0 0.0
    %294 = vmatpush1.msra.mxu0 %v170
    %295 = vmatprep.subr.mxu0 0.0
    %296 = vmatpush1.msra.mxu0 %v169
    %297 = vmatprep.subr.mxu0 0.0
    %298 = vmatpush2.msra.mxu0 0.0
    %299 = vmatprep.subr.mxu0 0.0
    %300 = vmatpush2.msra.mxu0 0.0
    %301 = vmatprep.subr.mxu0 0.0
    %302 = vmatpush2.msra.mxu0 0.0
    %303 = vmatprep.subr.mxu0 0.0
    %304 = vmatpush2.msra.mxu0 0.0
    %305 = vmatprep.subr.mxu0 0.0
    %306 = vmatpush2.msra.mxu0 0.0
    %307 = vmatprep.subr.mxu0 0.0
    %308 = vmatpush2.msra.mxu0 0.0
    %309 = vmatprep.subr.mxu0 0.0
    %310 = vmatpush2.msra.mxu0 0.0
    %311 = vmatprep.subr.mxu0 0.0
    %312 = vmatpush2.msra.mxu0 0.0
    %313 = vmatprep.subr.mxu0 0.0
    %314 = vmatpush2.msra.mxu0 0.0
    %315 = vmatprep.subr.mxu0 0.0
    %316 = vmatpush2.msra.mxu0 0.0
    %317 = vmatprep.subr.mxu0 0.0
    %318 = vmatpush2.msra.mxu0 0.0
    %319 = vmatprep.subr.mxu0 0.0
    %320 = vmatpush2.msra.mxu0 0.0
    %321 = vmatprep.subr.mxu0 0.0
    %322 = vmatpush2.msra.mxu0 0.0
    %323 = vmatprep.subr.mxu0 0.0
    %324 = vmatpush2.msra.mxu0 0.0
    %325 = vmatprep.subr.mxu0 0.0
    %326 = vmatpush2.msra.mxu0 0.0
    %327 = vmatprep.subr.mxu0 0.0
    %328 = vmatpush2.msra.mxu0 0.0
    %329 = vmatprep.mubr.f32.mxu0 0.0
    %330 = vmatmul.mubr.f32.gmra.mxu0 %v260
    %v331 = vpop.f32.mrf.mxu0
    %v332 = vadd.f32 %v251, %v331
    %v333 = vpop.f32.mrf.mxu0
    %334 = vmatprep.mubr.f32.mxu0 0.0
    %335 = vmatmul.mubr.f32.gmra.mxu0 %v263
    %v336 = vpop.f32.mrf.mxu0
    %v337 = vadd.f32 %v256, %v336
    %v338 = vpop.f32.mrf.mxu0
    %339 = vdwg.mxu0
    %s340 = scalar_lea.vmem [#allocation8], 64
    %v341 = vld [vmem:[%s340] sm:$0xff]
    %v342 = vld [vmem:[%s340 + $0x8] sm:$0xff]
    %v343 = vld [vmem:[%s340 + $0x10] sm:$0xff]
    %v344 = vld [vmem:[%s340 + $0x18] sm:$0xff]
    %v346 = vsel %vm100, %v167, 0
    %v349 = vsel %vm100, %v168, 0
    %351 = vmatprep.subr.mxu0 0.0
    %352 = vmatpush1.msra.mxu0 0.0
    %353 = vmatprep.subr.mxu0 0.0
    %354 = vmatpush1.msra.mxu0 0.0
    %355 = vmatprep.subr.mxu0 0.0
    %356 = vmatpush1.msra.mxu0 0.0
    %357 = vmatprep.subr.mxu0 0.0
    %358 = vmatpush1.msra.mxu0 0.0
    %359 = vmatprep.subr.mxu0 0.0
    %360 = vmatpush1.msra.mxu0 0.0
    %361 = vmatprep.subr.mxu0 0.0
    %362 = vmatpush1.msra.mxu0 0.0
    %363 = vmatprep.subr.mxu0 0.0
    %364 = vmatpush1.msra.mxu0 0.0
    %365 = vmatprep.subr.mxu0 0.0
    %366 = vmatpush1.msra.mxu0 0.0
    %367 = vmatprep.subr.mxu0 0.0
    %368 = vmatpush1.msra.mxu0 0.0
    %369 = vmatprep.subr.mxu0 0.0
    %370 = vmatpush1.msra.mxu0 0.0
    %371 = vmatprep.subr.mxu0 0.0
    %372 = vmatpush1.msra.mxu0 0.0
    %373 = vmatprep.subr.mxu0 0.0
    %374 = vmatpush1.msra.mxu0 0.0
    %375 = vmatprep.subr.mxu0 0.0
    %376 = vmatpush1.msra.mxu0 %v344
    %377 = vmatprep.subr.mxu0 0.0
    %378 = vmatpush1.msra.mxu0 %v343
    %379 = vmatprep.subr.mxu0 0.0
    %380 = vmatpush1.msra.mxu0 %v342
    %381 = vmatprep.subr.mxu0 0.0
    %382 = vmatpush1.msra.mxu0 %v341
    %383 = vmatprep.subr.mxu0 0.0
    %384 = vmatpush2.msra.mxu0 0.0
    %385 = vmatprep.subr.mxu0 0.0
    %386 = vmatpush2.msra.mxu0 0.0
    %387 = vmatprep.subr.mxu0 0.0
    %388 = vmatpush2.msra.mxu0 0.0
    %389 = vmatprep.subr.mxu0 0.0
    %390 = vmatpush2.msra.mxu0 0.0
    %391 = vmatprep.subr.mxu0 0.0
    %392 = vmatpush2.msra.mxu0 0.0
    %393 = vmatprep.subr.mxu0 0.0
    %394 = vmatpush2.msra.mxu0 0.0
    %395 = vmatprep.subr.mxu0 0.0
    %396 = vmatpush2.msra.mxu0 0.0
    %397 = vmatprep.subr.mxu0 0.0
    %398 = vmatpush2.msra.mxu0 0.0
    %399 = vmatprep.subr.mxu0 0.0
    %400 = vmatpush2.msra.mxu0 0.0
    %401 = vmatprep.subr.mxu0 0.0
    %402 = vmatpush2.msra.mxu0 0.0
    %403 = vmatprep.subr.mxu0 0.0
    %404 = vmatpush2.msra.mxu0 0.0
    %405 = vmatprep.subr.mxu0 0.0
    %406 = vmatpush2.msra.mxu0 0.0
    %407 = vmatprep.subr.mxu0 0.0
    %408 = vmatpush2.msra.mxu0 0.0
    %409 = vmatprep.subr.mxu0 0.0
    %410 = vmatpush2.msra.mxu0 0.0
    %411 = vmatprep.subr.mxu0 0.0
    %412 = vmatpush2.msra.mxu0 0.0
    %413 = vmatprep.subr.mxu0 0.0
    %414 = vmatpush2.msra.mxu0 0.0
    %415 = vmatprep.mubr.f32.mxu0 0.0
    %416 = vmatmul.mubr.f32.gmra.mxu0 %v346
    %v417 = vpop.f32.mrf.mxu0
    %v418 = vadd.f32 0.0, %v417
    %v419 = vpop.f32.mrf.mxu0
    %420 = vmatprep.mubr.f32.mxu0 0.0
    %421 = vmatmul.mubr.f32.gmra.mxu0 %v349
    %v422 = vpop.f32.mrf.mxu0
    %v423 = vadd.f32 0.0, %v422
    %v424 = vpop.f32.mrf.mxu0
    %425 = vdwg.mxu0
    %v426 = vadd.f32 %v332, %v418
    %v427 = vadd.f32 %v337, %v423
    %v428 = vld [vmem:[%s5] sm:$0x1]
    %v430 = vlaneseq
    %v431 = vshrl.u32 %v430, 7
    %v432 = vsub.s32 0, %v431
    %v433 = vrot.slane %v428, %v432
    %v435 = vadd.f32 %v426, %v433
    %v436 = vadd.f32 %v427, %v433
    %437 = vst [vmem:[#allocation10] sm:$0xff] %v435
    %438 = vst [vmem:[#allocation10 + $0x8] sm:$0xff] %v436
    // Predicated region
    $region42: #{tpu_custom_call.1} parent=1 // pred_check
      _
    $region43: #{tpu_custom_call.1} parent=1 // pred_check_branch
      %440 = sbr.rel (0) target = $region45
    $region44: #{tpu_custom_call.1} parent=1 // pred_region
      %s442 = ssub.s32 256, 256
      %443 = vsyncadd [#allocation4], %s442
      %s444 = sshll.u32 [#allocation10], 4
      %s445 = int_to_ptr.vmem [resolvable:$true] %s444
      %450 = dma.vmem_to_hbm [thread:$0]  %s445, 256, %s6, [#allocation4], 128, 128, 8
    $region45: #{tpu_custom_call.1} parent=1 // pred_fallthru
      _
    // Predicated region
    $region46: #{tpu_custom_call.1} parent=1 // pred_check
      _
    $region47: #{tpu_custom_call.1} parent=1 // pred_check_branch
      %452 = sbr.rel (0) target = $region49
    $region48: #{tpu_custom_call.1} parent=1 // pred_region
      %453 = dma.done [#allocation4], 256
    $region49: #{tpu_custom_call.1} parent=1 // pred_fallthru
      _
    %454 = vsyncpa [#allocation3], 1
    %455 = vsyncpa [#allocation6], 1
    %456 = vsyncpa [#allocation9], 1
    %457 = vsyncpa [#allocation4], 1

</llo_original>
